<compile_context>
chip_gen: v7x
topology: tpu7x:2x2x1
jax: 0.10.0
libtpu: 0.0.40
codegen_flags: <defaults>
</compile_context>

<pallas_src>
import functools

import jax
import jax.numpy as jnp
from jax import lax
from jax.experimental import pallas as pl
from jax.experimental.pallas import tpu as pltpu

D_MODEL = 32
NHEAD = 4
HEAD_DIM = D_MODEL // NHEAD
LN_EPS = 1e-5
LANE_WIDTH = 128
# Batch elements packed side-by-side along the lane axis (4 * 32 = 128 lanes).
LANE_PACK = LANE_WIDTH // D_MODEL if LANE_WIDTH % D_MODEL == 0 else 1


def _num_tensorcores():
    """Best-effort TensorCores-per-chip (v7x has 2; v5e/v6e have 1)."""
    try:
        info = pltpu.get_tpu_info()
        for name in ("num_cores", "core_count", "num_tensorcores", "tensorcore_count"):
            val = getattr(info, name, None)
            if val:
                return max(1, int(val))
    except Exception:
        pass
    try:
        kind = jax.devices()[0].device_kind.lower()
        if "7" in kind:            # "tpu7x" / "tpu v7x"
            return 2
    except Exception:
        pass
    return 1


def _choose_groups_per_step(ng, lq, lk, min_steps):
    """Largest divisor of `ng` (lane-packed groups) that keeps per-step slabs in a
    sensible range and leaves >= min_steps grid steps (dual-TC chips only)."""
    # <=1024 query rows/step and <=4096 stacked-key rows/step keeps the masked K/V
    # intermediates at ~2 MiB each; VMEM never binds on v5e/v6e/v7x for this kernel.
    cap = max(1, min(1024 // max(lq, 1), 4096 // (LANE_PACK * NHEAD * max(lk, 1))))
    best = 1
    for tg in range(1, ng + 1):
        if ng % tg == 0 and tg <= cap and ng // tg >= min_steps:
            best = tg
    return best


def _cross_attn_kernel(q_ref, k_ref, v_ref, w_ref, b_ref, hmask_ref, gseg_ref,
                       o_ref, *, tg, lq, lk):
    f32 = jnp.float32
    ep = q_ref.shape[-1]                         # LANE_PACK * D_MODEL (=128)
    sk = hmask_ref.shape[0]                      # LANE_PACK * NHEAD * lk

    q2 = q_ref[...].reshape(tg * lq, ep)         # lane-packed query rows
    k2 = k_ref[...].reshape(tg * lk, ep)
    v2 = v_ref[...].reshape(tg * lk, ep)

    # Stacked constant operands (constant index_map -> DMA'd once, resident).
    wq = w_ref[0]                                # block-diag Wq^T (1/sqrt(hd) pre-folded)
    wk = w_ref[1]
    wv = w_ref[2]
    wo = w_ref[3]
    mseg = w_ref[4]                              # per-32-lane-segment mean matrix
    b_all = b_ref[...]                           # (8, ep): bq,bk,bv,bo,gamma,beta,pad,pad
    bq, bk, bv = b_all[0:1], b_all[1:2], b_all[2:3]
    bo, gamma, beta = b_all[3:4], b_all[4:5], b_all[5:6]

    # Input projections: one 128-lane MXU matmul each over all tg*L rows.
    qp = jnp.dot(q2, wq, preferred_element_type=f32) + bq      # (tg*lq, ep)
    kp = jnp.dot(k2, wk, preferred_element_type=f32) + bk      # (tg*lk, ep)
    vp = jnp.dot(v2, wv, preferred_element_type=f32) + bv

    # (batch-in-group x head)-stacked, lane-masked K / V.  Row (b, h, k) keeps only
    # the 8 lanes of batch b / head h: this both selects the head slice for the score
    # contraction and isolates packed batches (no cross-batch terms anywhere).
    hm = hmask_ref[...]                                        # (sk, ep)
    reps = sk // lk                                            # LANE_PACK * NHEAD
    kp3 = kp.reshape(tg, lk, ep)
    vp3 = vp.reshape(tg, lk, ep)
    km = jnp.concatenate([kp3] * reps, axis=1) * hm[None]      # (tg, sk, ep)
    vm = jnp.concatenate([vp3] * reps, axis=1) * hm[None]

    # Scores for every batch/head in the step: one batched matmul, contraction on
    # lanes (no transposes, no per-batch loop).
    qp3 = qp.reshape(tg, lq, ep)
    s = lax.dot_general(qp3, km, (((2,), (2,)), ((0,), (0,))),
                        preferred_element_type=f32)            # (tg, lq, sk)
    s2 = s.reshape(tg * lq, sk)

    # Per-(batch, head) softmax over the key axis.  Subtracting the global row max is
    # algebraically exact for each segment (safe at these score magnitudes); gseg
    # broadcasts the per-segment sum back across its lk columns via one MXU matmul.
    m = jnp.max(s2, axis=-1, keepdims=True)
    e = jnp.exp(s2 - m)
    den = jnp.dot(e, gseg_ref[...], preferred_element_type=f32)
    inv = pl.reciprocal(den, approx=True)                      # EUP seed ...
    inv = inv * (2.0 - den * inv)                              # ... + Newton -> full f32
    p = (e * inv).reshape(tg, lq, sk)

    # PV: one batched matmul; vm's lane mask routes each (batch, head) to its own
    # 8-lane output block, yielding the concat-of-heads layout directly.
    attn = lax.dot_general(p, vm, (((2,), (1,)), ((0,), (0,))),
                           preferred_element_type=f32)         # (tg, lq, ep)
    attn2 = attn.reshape(tg * lq, ep)

    # Output projection + residual + per-32-lane-segment LayerNorm (stats via MXU).
    y = jnp.dot(attn2, wo, preferred_element_type=f32) + bo
    x = q2 + y
    mean = jnp.dot(x, mseg, preferred_element_type=f32)
    xc = x - mean
    var = jnp.dot(xc * xc, mseg, preferred_element_type=f32)
    xn = xc * lax.rsqrt(var + LN_EPS)
    o_ref[...] = (xn * gamma + beta).reshape(tg, lq, ep).astype(o_ref.dtype)


def _lane_pack(x, ng):
    """(B, L, E) -> (ng, L, LANE_PACK*E); zero-pads batch to ng*LANE_PACK.
    Padded batches are fully isolated by the block-diagonal weights / lane masks."""
    b, l, e = x.shape
    bp = ng * LANE_PACK
    if bp != b:
        x = jnp.concatenate([x, jnp.zeros((bp - b, l, e), x.dtype)], axis=0)
    return x.reshape(ng, LANE_PACK, l, e).transpose(0, 2, 1, 3).reshape(ng, l, LANE_PACK * e)


def _lane_unpack(y, b, e):
    ng, l, _ = y.shape
    out = y.reshape(ng, l, LANE_PACK, e).transpose(0, 2, 1, 3).reshape(ng * LANE_PACK, l, e)
    return out[:b]


def cross_attention_block(query, key, value, params):
    B, Lq, E = query.shape
    _, Lk, _ = key.shape
    assert E == D_MODEL and E % NHEAD == 0
    wq, wk, wv, bq, bk, bv, wo, bo, gamma, beta = params
    f32 = jnp.float32
    ep = LANE_PACK * E

    ng = -(-B // LANE_PACK)                      # lane-packed groups (ceil)
    min_steps = 2 if (_num_tensorcores() >= 2 and ng >= 2) else 1
    tg = _choose_groups_per_step(ng, Lq, Lk, min_steps)
    n_steps = ng // tg

    # ---- host-side constant prep (once per call) ----
    scale = 1.0 / (HEAD_DIM ** 0.5)
    eye = jnp.eye(LANE_PACK, dtype=f32)

    def blk(w):                                  # (E, E) -> block-diagonal (ep, ep)
        return jnp.kron(eye, w.astype(f32))

    lane_batch = jnp.arange(ep) // E             # per-32-lane-segment mean matrix (LN)
    mseg = (lane_batch[:, None] == lane_batch[None, :]).astype(f32) / E

    w_stack = jnp.stack(
        [blk(wq.T * scale), blk(wk.T), blk(wv.T), blk(wo.T), mseg], axis=0)   # (5, ep, ep)

    def lanes(vec):                              # (E,) -> (1, ep), replicated per packed batch
        return jnp.tile(vec.astype(f32).reshape(1, E), (1, LANE_PACK))

    b_stack = jnp.concatenate(
        [lanes(bq * scale), lanes(bk), lanes(bv), lanes(bo), lanes(gamma), lanes(beta),
         jnp.zeros((2, ep), f32)], axis=0)                                    # (8, ep)

    # Head/batch lane mask + softmax segment-sum matrix (hoisted out of the kernel).
    sk = LANE_PACK * NHEAD * Lk
    row_seg = jnp.arange(sk) // Lk
    lane_seg = jnp.arange(ep) // HEAD_DIM
    hmask = (row_seg[:, None] == lane_seg[None, :]).astype(f32)               # (sk, ep)
    gseg = (row_seg[:, None] == row_seg[None, :]).astype(f32)                 # (sk, sk)

    q3 = _lane_pack(query, ng)
    k3 = _lane_pack(key, ng)
    v3 = _lane_pack(value, ng)

    kernel = functools.partial(_cross_attn_kernel, tg=tg, lq=Lq, lk=Lk)
    const = lambda shp: pl.BlockSpec(shp, lambda g: (0,) * len(shp))

    out3 = pl.pallas_call(
        kernel,
        out_shape=jax.ShapeDtypeStruct((ng, Lq, ep), query.dtype),
        grid_spec=pltpu.PrefetchScalarGridSpec(
            num_scalar_prefetch=0,
            grid=(n_steps,),
            in_specs=[
                pl.BlockSpec((tg, Lq, ep), lambda g: (g, 0, 0)),   # query (lane-packed)
                pl.BlockSpec((tg, Lk, ep), lambda g: (g, 0, 0)),   # key
                pl.BlockSpec((tg, Lk, ep), lambda g: (g, 0, 0)),   # value
                const((5, ep, ep)),        # Wq^T | Wk^T | Wv^T | Wo^T | Mseg (block-diag)
                const((8, ep)),            # bq | bk | bv | bo | gamma | beta | pad | pad
                const((sk, ep)),           # head/batch lane mask
                const((sk, sk)),           # softmax segment-sum matrix
            ],
            out_specs=pl.BlockSpec((tg, Lq, ep), lambda g: (g, 0, 0)),
        ),
        compiler_params=pltpu.CompilerParams(
            dimension_semantics=("parallel",),
            # Working set is a few MB/step on every generation (incl. v7x's 64 MiB VMEM).
            vmem_limit_bytes=32 * 1024 * 1024,
        ),
    )(q3, k3, v3, w_stack, b_stack, hmask, gseg)

    return _lane_unpack(out3, B, E)


def reference(query, key, value, params):
    (wq, wk, wv, bq, bk, bv, wo, bo, gamma, beta) = params
    B, Lq, E = query.shape
    qp = query @ wq.T + bq
    kp = key @ wk.T + bk
    vp = value @ wv.T + bv

    def split(x):
        b, l, _ = x.shape
        return x.reshape(b, l, NHEAD, HEAD_DIM).transpose(0, 2, 1, 3)

    qh, kh, vh = split(qp), split(kp), split(vp)
    s = jnp.einsum("bhqd,bhkd->bhqk", qh, kh) / jnp.sqrt(jnp.float32(HEAD_DIM))
    p = jax.nn.softmax(s, axis=-1)
    o = jnp.einsum("bhqk,bhkd->bhqd", p, vh)
    o = o.transpose(0, 2, 1, 3).reshape(B, Lq, E)
    o = o @ wo.T + bo
    x = query + o
    mean = x.mean(-1, keepdims=True)
    var = ((x - mean) ** 2).mean(-1, keepdims=True)
    return (x - mean) / jnp.sqrt(var + LN_EPS) * gamma + beta


def init_params(key, d_model):
    ks = jax.random.split(key, 6)
    bound = 1.0 / jnp.sqrt(jnp.float32(d_model))
    in_proj_w = jax.random.uniform(ks[0], (3 * d_model, d_model),
                                   minval=-bound, maxval=bound, dtype=jnp.float32)
    in_proj_b = jax.random.uniform(ks[1], (3 * d_model,),
                                   minval=-bound, maxval=bound, dtype=jnp.float32)
    wq, wk, wv = (in_proj_w[:d_model], in_proj_w[d_model:2 * d_model],
                  in_proj_w[2 * d_model:])
    bq, bk, bv = (in_proj_b[:d_model], in_proj_b[d_model:2 * d_model],
                  in_proj_b[2 * d_model:])
    wo = jax.random.uniform(ks[2], (d_model, d_model),
                            minval=-bound, maxval=bound, dtype=jnp.float32)
    bo = jax.random.uniform(ks[3], (d_model,),
                            minval=-bound, maxval=bound, dtype=jnp.float32)
    gamma = jnp.ones((d_model,), jnp.float32)
    beta = jnp.zeros((d_model,), jnp.float32)
    return (wq, wk, wv, bq, bk, bv, wo, bo, gamma, beta)


if __name__ == "__main__":
    B, Lq, Lk = 2, 8, 8
    root = jax.random.PRNGKey(0)
    kq, kk, kv, kp = jax.random.split(root, 4)
    query = jax.random.normal(kq, (B, Lq, D_MODEL), dtype=jnp.float32)
    key = jax.random.normal(kk, (B, Lk, D_MODEL), dtype=jnp.float32)
    value = jax.random.normal(kv, (B, Lk, D_MODEL), dtype=jnp.float32)
    params = init_params(kp, D_MODEL)

    out = cross_attention_block(query, key, value, params)
    out = jax.block_until_ready(out)

    ref = reference(query, key, value, params)
    assert out.shape == (B, Lq, D_MODEL)
    assert jnp.allclose(out, ref, atol=2e-4, rtol=2e-4), "mismatch vs reference"
    print("KERNEL_OK")
</pallas_src>

<mosaic_0001>
module attributes {stable_mosaic.version = 11 : i64} {
  func.func @_cross_attn_kernel(%arg0: i32, %arg1: memref<1x8x128xf32, #tpu.memory_space<vmem>>, %arg2: memref<1x8x128xf32, #tpu.memory_space<vmem>>, %arg3: memref<1x8x128xf32, #tpu.memory_space<vmem>>, %arg4: memref<5x128x128xf32, #tpu.memory_space<vmem>>, %arg5: memref<8x128xf32, #tpu.memory_space<vmem>>, %arg6: memref<128x128xf32, #tpu.memory_space<vmem>>, %arg7: memref<128x128xf32, #tpu.memory_space<vmem>>, %arg8: memref<1x8x128xf32, #tpu.memory_space<vmem>>) attributes {dimension_semantics = [#tpu.dimension_semantics<parallel>], iteration_bounds = array<i64: 1>, scalar_prefetch = 0 : i64, scratch_operands = 0 : i64, tpu.core_type = #tpu.core_type<tc>, window_params = [{transform_indices = @transform_0, window_bounds = array<i64: 1, 8, 128>}, {transform_indices = @transform_1, window_bounds = array<i64: 1, 8, 128>}, {transform_indices = @transform_2, window_bounds = array<i64: 1, 8, 128>}, {pipeline_mode = #tpu.pipeline_mode<synchronous>, transform_indices = @transform_3, window_bounds = array<i64: 5, 128, 128>}, {pipeline_mode = #tpu.pipeline_mode<synchronous>, transform_indices = @transform_4, window_bounds = array<i64: 8, 128>}, {pipeline_mode = #tpu.pipeline_mode<synchronous>, transform_indices = @transform_5, window_bounds = array<i64: 128, 128>}, {pipeline_mode = #tpu.pipeline_mode<synchronous>, transform_indices = @transform_6, window_bounds = array<i64: 128, 128>}, {transform_indices = @transform_7, window_bounds = array<i64: 1, 8, 128>}]} {
    %c0 = arith.constant 0 : index
    %c0_0 = arith.constant 0 : index
    %c0_1 = arith.constant 0 : index
    %0 = vector.load %arg1[%c0, %c0_0, %c0_1] : memref<1x8x128xf32, #tpu.memory_space<vmem>>, vector<1x8x128xf32>
    %1 = vector.shape_cast %0 : vector<1x8x128xf32> to vector<8x128xf32>
    %c0_2 = arith.constant 0 : index
    %c0_3 = arith.constant 0 : index
    %c0_4 = arith.constant 0 : index
    %2 = vector.load %arg2[%c0_2, %c0_3, %c0_4] : memref<1x8x128xf32, #tpu.memory_space<vmem>>, vector<1x8x128xf32>
    %3 = vector.shape_cast %2 : vector<1x8x128xf32> to vector<8x128xf32>
    %c0_5 = arith.constant 0 : index
    %c0_6 = arith.constant 0 : index
    %c0_7 = arith.constant 0 : index
    %4 = vector.load %arg3[%c0_5, %c0_6, %c0_7] : memref<1x8x128xf32, #tpu.memory_space<vmem>>, vector<1x8x128xf32>
    %5 = vector.shape_cast %4 : vector<1x8x128xf32> to vector<8x128xf32>
    %c0_8 = arith.constant 0 : index
    %c0_9 = arith.constant 0 : index
    %c0_10 = arith.constant 0 : index
    %6 = vector.load %arg4[%c0_8, %c0_9, %c0_10] : memref<5x128x128xf32, #tpu.memory_space<vmem>>, vector<1x128x128xf32>
    %7 = vector.shape_cast %6 : vector<1x128x128xf32> to vector<128x128xf32>
    %c1 = arith.constant 1 : index
    %c0_11 = arith.constant 0 : index
    %c0_12 = arith.constant 0 : index
    %8 = vector.load %arg4[%c1, %c0_11, %c0_12] : memref<5x128x128xf32, #tpu.memory_space<vmem>>, vector<1x128x128xf32>
    %9 = vector.shape_cast %8 : vector<1x128x128xf32> to vector<128x128xf32>
    %c2 = arith.constant 2 : index
    %c0_13 = arith.constant 0 : index
    %c0_14 = arith.constant 0 : index
    %10 = vector.load %arg4[%c2, %c0_13, %c0_14] : memref<5x128x128xf32, #tpu.memory_space<vmem>>, vector<1x128x128xf32>
    %11 = vector.shape_cast %10 : vector<1x128x128xf32> to vector<128x128xf32>
    %c3 = arith.constant 3 : index
    %c0_15 = arith.constant 0 : index
    %c0_16 = arith.constant 0 : index
    %12 = vector.load %arg4[%c3, %c0_15, %c0_16] : memref<5x128x128xf32, #tpu.memory_space<vmem>>, vector<1x128x128xf32>
    %13 = vector.shape_cast %12 : vector<1x128x128xf32> to vector<128x128xf32>
    %c4 = arith.constant 4 : index
    %c0_17 = arith.constant 0 : index
    %c0_18 = arith.constant 0 : index
    %14 = vector.load %arg4[%c4, %c0_17, %c0_18] : memref<5x128x128xf32, #tpu.memory_space<vmem>>, vector<1x128x128xf32>
    %15 = vector.shape_cast %14 : vector<1x128x128xf32> to vector<128x128xf32>
    %c0_19 = arith.constant 0 : index
    %c0_20 = arith.constant 0 : index
    %16 = vector.load %arg5[%c0_19, %c0_20] : memref<8x128xf32, #tpu.memory_space<vmem>>, vector<8x128xf32>
    %17 = vector.extract_strided_slice %16 {offsets = [0, 0], sizes = [1, 128], strides = [1, 1]} : vector<8x128xf32> to vector<1x128xf32>
    %18 = vector.extract_strided_slice %16 {offsets = [1, 0], sizes = [1, 128], strides = [1, 1]} : vector<8x128xf32> to vector<1x128xf32>
    %19 = vector.extract_strided_slice %16 {offsets = [2, 0], sizes = [1, 128], strides = [1, 1]} : vector<8x128xf32> to vector<1x128xf32>
    %20 = vector.extract_strided_slice %16 {offsets = [3, 0], sizes = [1, 128], strides = [1, 1]} : vector<8x128xf32> to vector<1x128xf32>
    %21 = vector.extract_strided_slice %16 {offsets = [4, 0], sizes = [1, 128], strides = [1, 1]} : vector<8x128xf32> to vector<1x128xf32>
    %22 = vector.extract_strided_slice %16 {offsets = [5, 0], sizes = [1, 128], strides = [1, 1]} : vector<8x128xf32> to vector<1x128xf32>
    %cst = arith.constant dense<0.000000e+00> : vector<8x128xf32>
    %23 = tpu.matmul %1, %7, %cst {dimension_numbers = #tpu.dot_dimension_numbers<[1], [0], [0], [1], [0, 0, 1, 1], [], []>} : vector<8x128xf32>, vector<128x128xf32>, vector<8x128xf32> -> vector<8x128xf32>
    %24 = vector.broadcast %17 : vector<1x128xf32> to vector<8x128xf32>
    %25 = arith.addf %23, %24 : vector<8x128xf32>
    %cst_21 = arith.constant dense<0.000000e+00> : vector<8x128xf32>
    %26 = tpu.matmul %3, %9, %cst_21 {dimension_numbers = #tpu.dot_dimension_numbers<[1], [0], [0], [1], [0, 0, 1, 1], [], []>} : vector<8x128xf32>, vector<128x128xf32>, vector<8x128xf32> -> vector<8x128xf32>
    %27 = vector.broadcast %18 : vector<1x128xf32> to vector<8x128xf32>
    %28 = arith.addf %26, %27 : vector<8x128xf32>
    %cst_22 = arith.constant dense<0.000000e+00> : vector<8x128xf32>
    %29 = tpu.matmul %5, %11, %cst_22 {dimension_numbers = #tpu.dot_dimension_numbers<[1], [0], [0], [1], [0, 0, 1, 1], [], []>} : vector<8x128xf32>, vector<128x128xf32>, vector<8x128xf32> -> vector<8x128xf32>
    %30 = vector.broadcast %19 : vector<1x128xf32> to vector<8x128xf32>
    %31 = arith.addf %29, %30 : vector<8x128xf32>
    %c0_23 = arith.constant 0 : index
    %c0_24 = arith.constant 0 : index
    %32 = vector.load %arg6[%c0_23, %c0_24] : memref<128x128xf32, #tpu.memory_space<vmem>>, vector<128x128xf32>
    %33 = vector.shape_cast %28 : vector<8x128xf32> to vector<1x8x128xf32>
    %34 = vector.shape_cast %31 : vector<8x128xf32> to vector<1x8x128xf32>
    %35 = tpu.concatenate %33, %33, %33, %33, %33, %33, %33, %33, %33, %33, %33, %33, %33, %33, %33, %33 in 1 : vector<1x8x128xf32>, vector<1x8x128xf32>, vector<1x8x128xf32>, vector<1x8x128xf32>, vector<1x8x128xf32>, vector<1x8x128xf32>, vector<1x8x128xf32>, vector<1x8x128xf32>, vector<1x8x128xf32>, vector<1x8x128xf32>, vector<1x8x128xf32>, vector<1x8x128xf32>, vector<1x8x128xf32>, vector<1x8x128xf32>, vector<1x8x128xf32>, vector<1x8x128xf32> -> vector<1x128x128xf32>
    %36 = vector.shape_cast %32 : vector<128x128xf32> to vector<1x128x128xf32>
    %37 = arith.mulf %35, %36 : vector<1x128x128xf32>
    %38 = tpu.concatenate %34, %34, %34, %34, %34, %34, %34, %34, %34, %34, %34, %34, %34, %34, %34, %34 in 1 : vector<1x8x128xf32>, vector<1x8x128xf32>, vector<1x8x128xf32>, vector<1x8x128xf32>, vector<1x8x128xf32>, vector<1x8x128xf32>, vector<1x8x128xf32>, vector<1x8x128xf32>, vector<1x8x128xf32>, vector<1x8x128xf32>, vector<1x8x128xf32>, vector<1x8x128xf32>, vector<1x8x128xf32>, vector<1x8x128xf32>, vector<1x8x128xf32>, vector<1x8x128xf32> -> vector<1x128x128xf32>
    %39 = vector.shape_cast %32 : vector<128x128xf32> to vector<1x128x128xf32>
    %40 = arith.mulf %38, %39 : vector<1x128x128xf32>
    %41 = vector.shape_cast %25 : vector<8x128xf32> to vector<1x8x128xf32>
    %cst_25 = arith.constant dense<0.000000e+00> : vector<1x8x128xf32>
    %42 = tpu.matmul %41, %37, %cst_25 {dimension_numbers = #tpu.dot_dimension_numbers<[2], [2], [1], [1], [0, 0, 0, 1, 1, 1], [0], [0]>} : vector<1x8x128xf32>, vector<1x128x128xf32>, vector<1x8x128xf32> -> vector<1x8x128xf32>
    %43 = vector.shape_cast %42 : vector<1x8x128xf32> to vector<8x128xf32>
    %cst_26 = arith.constant dense<0xFF800000> : vector<8xf32>
    %44 = vector.multi_reduction <maximumf>, %43, %cst_26 [1] : vector<8x128xf32> to vector<8xf32>
    %45 = vector.shape_cast %44 : vector<8xf32> to vector<8x1xf32>
    %46 = vector.broadcast %45 : vector<8x1xf32> to vector<8x128xf32>
    %47 = arith.subf %43, %46 : vector<8x128xf32>
    %48 = math.exp %47 : vector<8x128xf32>
    %c0_27 = arith.constant 0 : index
    %c0_28 = arith.constant 0 : index
    %49 = vector.load %arg7[%c0_27, %c0_28] : memref<128x128xf32, #tpu.memory_space<vmem>>, vector<128x128xf32>
    %cst_29 = arith.constant dense<0.000000e+00> : vector<8x128xf32>
    %50 = tpu.matmul %48, %49, %cst_29 {dimension_numbers = #tpu.dot_dimension_numbers<[1], [0], [0], [1], [0, 0, 1, 1], [], []>} : vector<8x128xf32>, vector<128x128xf32>, vector<8x128xf32> -> vector<8x128xf32>
    %51 = tpu.reciprocal %50 {approx = true} : vector<8x128xf32> -> vector<8x128xf32>
    %52 = arith.mulf %50, %51 : vector<8x128xf32>
    %cst_30 = arith.constant 2.000000e+00 : f32
    %53 = vector.broadcast %cst_30 : f32 to vector<8x128xf32>
    %54 = arith.subf %53, %52 : vector<8x128xf32>
    %55 = arith.mulf %51, %54 : vector<8x128xf32>
    %56 = arith.mulf %48, %55 : vector<8x128xf32>
    %57 = vector.shape_cast %56 : vector<8x128xf32> to vector<1x8x128xf32>
    %cst_31 = arith.constant dense<0.000000e+00> : vector<1x8x128xf32>
    %58 = tpu.matmul %57, %40, %cst_31 {dimension_numbers = #tpu.dot_dimension_numbers<[2], [1], [1], [2], [0, 0, 0, 1, 1, 2], [0], [0]>} : vector<1x8x128xf32>, vector<1x128x128xf32>, vector<1x8x128xf32> -> vector<1x8x128xf32>
    %59 = vector.shape_cast %58 : vector<1x8x128xf32> to vector<8x128xf32>
    %cst_32 = arith.constant dense<0.000000e+00> : vector<8x128xf32>
    %60 = tpu.matmul %59, %13, %cst_32 {dimension_numbers = #tpu.dot_dimension_numbers<[1], [0], [0], [1], [0, 0, 1, 1], [], []>} : vector<8x128xf32>, vector<128x128xf32>, vector<8x128xf32> -> vector<8x128xf32>
    %61 = vector.broadcast %20 : vector<1x128xf32> to vector<8x128xf32>
    %62 = arith.addf %60, %61 : vector<8x128xf32>
    %63 = arith.addf %1, %62 : vector<8x128xf32>
    %cst_33 = arith.constant dense<0.000000e+00> : vector<8x128xf32>
    %64 = tpu.matmul %63, %15, %cst_33 {dimension_numbers = #tpu.dot_dimension_numbers<[1], [0], [0], [1], [0, 0, 1, 1], [], []>} : vector<8x128xf32>, vector<128x128xf32>, vector<8x128xf32> -> vector<8x128xf32>
    %65 = arith.subf %63, %64 : vector<8x128xf32>
    %66 = arith.mulf %65, %65 : vector<8x128xf32>
    %cst_34 = arith.constant dense<0.000000e+00> : vector<8x128xf32>
    %67 = tpu.matmul %66, %15, %cst_34 {dimension_numbers = #tpu.dot_dimension_numbers<[1], [0], [0], [1], [0, 0, 1, 1], [], []>} : vector<8x128xf32>, vector<128x128xf32>, vector<8x128xf32> -> vector<8x128xf32>
    %cst_35 = arith.constant 9.99999974E-6 : f32
    %68 = vector.broadcast %cst_35 : f32 to vector<8x128xf32>
    %69 = arith.addf %67, %68 : vector<8x128xf32>
    %70 = math.rsqrt %69 : vector<8x128xf32>
    %71 = arith.mulf %65, %70 : vector<8x128xf32>
    %72 = vector.broadcast %21 : vector<1x128xf32> to vector<8x128xf32>
    %73 = arith.mulf %71, %72 : vector<8x128xf32>
    %74 = vector.broadcast %22 : vector<1x128xf32> to vector<8x128xf32>
    %75 = arith.addf %73, %74 : vector<8x128xf32>
    %76 = vector.shape_cast %75 : vector<8x128xf32> to vector<1x8x128xf32>
    %c0_36 = arith.constant 0 : index
    %c0_37 = arith.constant 0 : index
    %c0_38 = arith.constant 0 : index
    %77 = vector.load %arg8[%c0_36, %c0_37, %c0_38] : memref<1x8x128xf32, #tpu.memory_space<vmem>>, vector<1x8x128xf32>
    tpu.vector_store %arg8[%c0_36, %c0_37, %c0_38], %76 {strides = array<i32>} : memref<1x8x128xf32, #tpu.memory_space<vmem>>, vector<1x8x128xf32>,
    return
  }
  func.func @transform_0(%arg0: i32) -> (i32, i32, i32) {
    %c0_i32 = arith.constant 0 : i32
    %c0_i32_0 = arith.constant 0 : i32
    %c0_i32_1 = arith.constant 0 : i32
    return %arg0, %c0_i32, %c0_i32_0 : i32, i32, i32
  }
  func.func @transform_1(%arg0: i32) -> (i32, i32, i32) {
    %c0_i32 = arith.constant 0 : i32
    %c0_i32_0 = arith.constant 0 : i32
    %c0_i32_1 = arith.constant 0 : i32
    return %arg0, %c0_i32, %c0_i32_0 : i32, i32, i32
  }
  func.func @transform_2(%arg0: i32) -> (i32, i32, i32) {
    %c0_i32 = arith.constant 0 : i32
    %c0_i32_0 = arith.constant 0 : i32
    %c0_i32_1 = arith.constant 0 : i32
    return %arg0, %c0_i32, %c0_i32_0 : i32, i32, i32
  }
  func.func @transform_3(%arg0: i32) -> (i32, i32, i32) {
    %c0_i32 = arith.constant 0 : i32
    %c0_i32_0 = arith.constant 0 : i32
    %c0_i32_1 = arith.constant 0 : i32
    %c0_i32_2 = arith.constant 0 : i32
    return %c0_i32, %c0_i32_0, %c0_i32_1 : i32, i32, i32
  }
  func.func @transform_4(%arg0: i32) -> (i32, i32) {
    %c0_i32 = arith.constant 0 : i32
    %c0_i32_0 = arith.constant 0 : i32
    %c0_i32_1 = arith.constant 0 : i32
    return %c0_i32, %c0_i32_0 : i32, i32
  }
  func.func @transform_5(%arg0: i32) -> (i32, i32) {
    %c0_i32 = arith.constant 0 : i32
    %c0_i32_0 = arith.constant 0 : i32
    %c0_i32_1 = arith.constant 0 : i32
    return %c0_i32, %c0_i32_0 : i32, i32
  }
  func.func @transform_6(%arg0: i32) -> (i32, i32) {
    %c0_i32 = arith.constant 0 : i32
    %c0_i32_0 = arith.constant 0 : i32
    %c0_i32_1 = arith.constant 0 : i32
    return %c0_i32, %c0_i32_0 : i32, i32
  }
  func.func @transform_7(%arg0: i32) -> (i32, i32, i32) {
    %c0_i32 = arith.constant 0 : i32
    %c0_i32_0 = arith.constant 0 : i32
    %c0_i32_1 = arith.constant 0 : i32
    return %arg0, %c0_i32, %c0_i32_0 : i32, i32, i32
  }
}

</mosaic_0001>

<llo_original>
// kernel: tpu_custom_call.1
$region0: #{tpu_custom_call.1}
  #allocation0 [shape = 'u32[]', space=smem, size = 0x4, offset = 0x4, fixed_abs, tag = 'smem constant byte address 0x4 - core index']
  #allocation1 [shape = 'u32[144,128]{1,0:T(1,128)}', space=vmem, size = 0x12000, scoped, tag = 'internal scratch']
  %s0 = inlined_call_operand.hbm [shape: f32[1,8,128], index: 0, kind: input, shape index: {}]
  %s1 = inlined_call_operand.hbm [shape: f32[1,8,128], index: 1, kind: input, shape index: {}]
  %s2 = inlined_call_operand.hbm [shape: f32[1,8,128], index: 2, kind: input, shape index: {}]
  %s3 = inlined_call_operand.hbm [shape: f32[5,128,128], index: 3, kind: input, shape index: {}]
  %s4 = inlined_call_operand.vmem [shape: f32[8,128], index: 4, kind: input, shape index: {}]
  %s5 = inlined_call_operand.hbm [shape: f32[128,128], index: 5, kind: input, shape index: {}]
  %s6 = inlined_call_operand.hbm [shape: f32[128,128], index: 6, kind: input, shape index: {}]
  %s7 = inlined_call_operand.hbm [shape: f32[1,8,128], index: 7, kind: output, shape index: {}]
  %s8 = sld [smem:[#allocation0]]
  $region62: #{tpu_custom_call.1} parent=0
    _
  %s10 = ssub.s32 1, %s8
  %s11 = scalar_select 0, %s10, %s8
  $region1: #{tpu_custom_call.1} parent=0
    #allocation2 [shape = 'u8[4096]{0}', space=vmem, size = 0x1000, scoped, tag = 'input window, operand 0, single buffered']
    #allocation3 [shape = 's32[1]{0}', space=sflag, size = 0x4, scoped, tag = 'scoped memory for tpu_custom_call.1']
    #allocation4 [shape = 's32[1]{0}', space=sflag, size = 0x4, scoped, tag = 'scoped memory for tpu_custom_call.1']
    #allocation5 [shape = 'u8[4096]{0}', space=vmem, size = 0x1000, scoped, tag = 'input window, operand 1, single buffered']
    #allocation6 [shape = 's32[1]{0}', space=sflag, size = 0x4, scoped, tag = 'scoped memory for tpu_custom_call.1']
    #allocation7 [shape = 'u8[4096]{0}', space=vmem, size = 0x1000, scoped, tag = 'input window, operand 2, single buffered']
    #allocation8 [shape = 'u8[327680]{0}', space=vmem, size = 0x50000, scoped, tag = 'input window, operand 3, single buffered']
    #allocation9 [shape = 's32[1]{0}', space=sflag, size = 0x4, scoped, tag = 'scoped memory for tpu_custom_call.1']
    #allocation10 [shape = 'u8[65536]{0}', space=vmem, size = 0x10000, scoped, tag = 'input window, operand 5, single buffered']
    #allocation11 [shape = 'u8[65536]{0}', space=vmem, size = 0x10000, scoped, tag = 'input window, operand 6, single buffered']
    #allocation12 [shape = 's32[1]{0}', space=sflag, size = 0x4, scoped, tag = 'scoped memory for tpu_custom_call.1']
    #allocation13 [shape = 'u8[4096]{0}', space=vmem, size = 0x1000, scoped, tag = 'output window, operand 0, single buffered']
    %12 = vsyncpa [#allocation3], 0
    %13 = vsyncpa [#allocation6], 0
    %14 = vsyncpa [#allocation9], 0
    %15 = vsyncpa [#allocation12], 0
    %16 = vsyncpa [#allocation4], 0
    // Predicated region
    $region2: #{tpu_custom_call.1} parent=1 // pred_check
      _
    $region3: #{tpu_custom_call.1} parent=1 // pred_check_branch
      %18 = sbr.rel (0) target = $region5
    $region4: #{tpu_custom_call.1} parent=1 // pred_region
      %s20 = ssub.s32 128, 128
      %21 = vsyncadd [#allocation3], %s20
      %s23 = sshll.u32 [#allocation2], 4
      %s24 = int_to_ptr.vmem [resolvable:$true] %s23
      %26 = dma.hbm_to_vmem [thread:$0]  %s0, 128, %s24, [#allocation3]
    $region5: #{tpu_custom_call.1} parent=1 // pred_fallthru
      _
    // Predicated region
    $region6: #{tpu_custom_call.1} parent=1 // pred_check
      _
    $region7: #{tpu_custom_call.1} parent=1 // pred_check_branch
      %28 = sbr.rel (0) target = $region9
    $region8: #{tpu_custom_call.1} parent=1 // pred_region
      %s30 = ssub.s32 128, 128
      %31 = vsyncadd [#allocation6], %s30
      %s33 = sshll.u32 [#allocation5], 4
      %s34 = int_to_ptr.vmem [resolvable:$true] %s33
      %36 = dma.hbm_to_vmem [thread:$0]  %s1, 128, %s34, [#allocation6]
    $region9: #{tpu_custom_call.1} parent=1 // pred_fallthru
      _
    // Predicated region
    $region10: #{tpu_custom_call.1} parent=1 // pred_check
      _
    $region11: #{tpu_custom_call.1} parent=1 // pred_check_branch
      %38 = sbr.rel (0) target = $region13
    $region12: #{tpu_custom_call.1} parent=1 // pred_region
      %s40 = ssub.s32 128, 128
      %41 = vsyncadd [#allocation6], %s40
      %s43 = sshll.u32 [#allocation7], 4
      %s44 = int_to_ptr.vmem [resolvable:$true] %s43
      %46 = dma.hbm_to_vmem [thread:$0]  %s2, 128, %s44, [#allocation6]
    $region13: #{tpu_custom_call.1} parent=1 // pred_fallthru
      _
    // Predicated region
    $region14: #{tpu_custom_call.1} parent=1 // pred_check
      _
    $region15: #{tpu_custom_call.1} parent=1 // pred_check_branch
      %48 = sbr.rel (0) target = $region17
    $region16: #{tpu_custom_call.1} parent=1 // pred_region
      %s50 = ssub.s32 10240, 10240
      %51 = vsyncadd [#allocation9], %s50
      %s52 = sshll.u32 [#allocation8], 4
      %s53 = int_to_ptr.vmem [resolvable:$true] %s52
      %58 = dma.hbm_to_vmem [thread:$0]  %s3, 10240, %s53, [#allocation9], 128, 128, 8
    $region17: #{tpu_custom_call.1} parent=1 // pred_fallthru
      _
    // Predicated region
    $region18: #{tpu_custom_call.1} parent=1 // pred_check
      _
    $region19: #{tpu_custom_call.1} parent=1 // pred_check_branch
      %60 = sbr.rel (0) target = $region21
    $region20: #{tpu_custom_call.1} parent=1 // pred_region
      _
    $region21: #{tpu_custom_call.1} parent=1 // pred_fallthru
      _
    // Predicated region
    $region22: #{tpu_custom_call.1} parent=1 // pred_check
      _
    $region23: #{tpu_custom_call.1} parent=1 // pred_check_branch
      %62 = sbr.rel (0) target = $region25
    $region24: #{tpu_custom_call.1} parent=1 // pred_region
      %s64 = ssub.s32 2048, 2048
      %65 = vsyncadd [#allocation9], %s64
      %s66 = sshll.u32 [#allocation10], 4
      %s67 = int_to_ptr.vmem [resolvable:$true] %s66
      %72 = dma.hbm_to_vmem [thread:$0]  %s5, 2048, %s67, [#allocation9], 128, 128, 8
    $region25: #{tpu_custom_call.1} parent=1 // pred_fallthru
      _
    // Predicated region
    $region26: #{tpu_custom_call.1} parent=1 // pred_check
      _
    $region27: #{tpu_custom_call.1} parent=1 // pred_check_branch
      %74 = sbr.rel (0) target = $region29
    $region28: #{tpu_custom_call.1} parent=1 // pred_region
      %s76 = ssub.s32 2048, 2048
      %77 = vsyncadd [#allocation12], %s76
      %s78 = sshll.u32 [#allocation11], 4
      %s79 = int_to_ptr.vmem [resolvable:$true] %s78
      %84 = dma.hbm_to_vmem [thread:$0]  %s6, 2048, %s79, [#allocation12], 128, 128, 8
    $region29: #{tpu_custom_call.1} parent=1 // pred_fallthru
      _
    // Predicated region
    $region30: #{tpu_custom_call.1} parent=1 // pred_check
      _
    $region31: #{tpu_custom_call.1} parent=1 // pred_check_branch
      %86 = sbr.rel (0) target = $region33
    $region32: #{tpu_custom_call.1} parent=1 // pred_region
      %87 = dma.done [#allocation3], 128
    $region33: #{tpu_custom_call.1} parent=1 // pred_fallthru
      _
    // Predicated region
    $region34: #{tpu_custom_call.1} parent=1 // pred_check
      _
    $region35: #{tpu_custom_call.1} parent=1 // pred_check_branch
      %89 = sbr.rel (0) target = $region37
    $region36: #{tpu_custom_call.1} parent=1 // pred_region
      %90 = dma.done [#allocation6], 128
    $region37: #{tpu_custom_call.1} parent=1 // pred_fallthru
      _
    // Predicated region
    $region38: #{tpu_custom_call.1} parent=1 // pred_check
      _
    $region39: #{tpu_custom_call.1} parent=1 // pred_check_branch
      %92 = sbr.rel (0) target = $region41
    $region40: #{tpu_custom_call.1} parent=1 // pred_region
      %93 = dma.done [#allocation6], 128
    $region41: #{tpu_custom_call.1} parent=1 // pred_fallthru
      _
    // Predicated region
    $region42: #{tpu_custom_call.1} parent=1 // pred_check
      _
    $region43: #{tpu_custom_call.1} parent=1 // pred_check_branch
      %95 = sbr.rel (0) target = $region45
    $region44: #{tpu_custom_call.1} parent=1 // pred_region
      %96 = dma.done [#allocation9], 10240
    $region45: #{tpu_custom_call.1} parent=1 // pred_fallthru
      _
    // Predicated region
    $region46: #{tpu_custom_call.1} parent=1 // pred_check
      _
    $region47: #{tpu_custom_call.1} parent=1 // pred_check_branch
      %98 = sbr.rel (0) target = $region49
    $region48: #{tpu_custom_call.1} parent=1 // pred_region
      %99 = dma.done [#allocation9], 2048
    $region49: #{tpu_custom_call.1} parent=1 // pred_fallthru
      _
    // Predicated region
    $region50: #{tpu_custom_call.1} parent=1 // pred_check
      _
    $region51: #{tpu_custom_call.1} parent=1 // pred_check_branch
      %101 = sbr.rel (0) target = $region53
    $region52: #{tpu_custom_call.1} parent=1 // pred_region
      %102 = dma.done [#allocation12], 2048
    $region53: #{tpu_custom_call.1} parent=1 // pred_fallthru
      _
    %v103 = vld [vmem:[#allocation2] sm:$0xff]
    %v104 = vld [vmem:[#allocation5] sm:$0xff]
    %v105 = vld [vmem:[#allocation7] sm:$0xff]
    %v106 = vld [vmem:[#allocation8] sm:$0xff]
    %v107 = vld [vmem:[#allocation8 + $0x8] sm:$0xff]
    %v108 = vld [vmem:[#allocation8 + $0x10] sm:$0xff]
    %v109 = vld [vmem:[#allocation8 + $0x18] sm:$0xff]
    %v110 = vld [vmem:[#allocation8 + $0x20] sm:$0xff]
    %v111 = vld [vmem:[#allocation8 + $0x28] sm:$0xff]
    %v112 = vld [vmem:[#allocation8 + $0x30] sm:$0xff]
    %v113 = vld [vmem:[#allocation8 + $0x38] sm:$0xff]
    %v114 = vld [vmem:[#allocation8 + $0x40] sm:$0xff]
    %v115 = vld [vmem:[#allocation8 + $0x48] sm:$0xff]
    %v116 = vld [vmem:[#allocation8 + $0x50] sm:$0xff]
    %v117 = vld [vmem:[#allocation8 + $0x58] sm:$0xff]
    %v118 = vld [vmem:[#allocation8 + $0x60] sm:$0xff]
    %v119 = vld [vmem:[#allocation8 + $0x68] sm:$0xff]
    %v120 = vld [vmem:[#allocation8 + $0x70] sm:$0xff]
    %v121 = vld [vmem:[#allocation8 + $0x78] sm:$0xff]
    %s122 = scalar_lea.vmem [#allocation8], 128
    %v123 = vld [vmem:[%s122] sm:$0xff]
    %v124 = vld [vmem:[%s122 + $0x8] sm:$0xff]
    %v125 = vld [vmem:[%s122 + $0x10] sm:$0xff]
    %v126 = vld [vmem:[%s122 + $0x18] sm:$0xff]
    %v127 = vld [vmem:[%s122 + $0x20] sm:$0xff]
    %v128 = vld [vmem:[%s122 + $0x28] sm:$0xff]
    %v129 = vld [vmem:[%s122 + $0x30] sm:$0xff]
    %v130 = vld [vmem:[%s122 + $0x38] sm:$0xff]
    %v131 = vld [vmem:[%s122 + $0x40] sm:$0xff]
    %v132 = vld [vmem:[%s122 + $0x48] sm:$0xff]
    %v133 = vld [vmem:[%s122 + $0x50] sm:$0xff]
    %v134 = vld [vmem:[%s122 + $0x58] sm:$0xff]
    %v135 = vld [vmem:[%s122 + $0x60] sm:$0xff]
    %v136 = vld [vmem:[%s122 + $0x68] sm:$0xff]
    %v137 = vld [vmem:[%s122 + $0x70] sm:$0xff]
    %v138 = vld [vmem:[%s122 + $0x78] sm:$0xff]
    %s139 = scalar_lea.vmem [#allocation8], 256
    %v140 = vld [vmem:[%s139] sm:$0xff]
    %v141 = vld [vmem:[%s139 + $0x8] sm:$0xff]
    %v142 = vld [vmem:[%s139 + $0x10] sm:$0xff]
    %v143 = vld [vmem:[%s139 + $0x18] sm:$0xff]
    %v144 = vld [vmem:[%s139 + $0x20] sm:$0xff]
    %v145 = vld [vmem:[%s139 + $0x28] sm:$0xff]
    %v146 = vld [vmem:[%s139 + $0x30] sm:$0xff]
    %v147 = vld [vmem:[%s139 + $0x38] sm:$0xff]
    %v148 = vld [vmem:[%s139 + $0x40] sm:$0xff]
    %v149 = vld [vmem:[%s139 + $0x48] sm:$0xff]
    %v150 = vld [vmem:[%s139 + $0x50] sm:$0xff]
    %v151 = vld [vmem:[%s139 + $0x58] sm:$0xff]
    %v152 = vld [vmem:[%s139 + $0x60] sm:$0xff]
    %v153 = vld [vmem:[%s139 + $0x68] sm:$0xff]
    %v154 = vld [vmem:[%s139 + $0x70] sm:$0xff]
    %v155 = vld [vmem:[%s139 + $0x78] sm:$0xff]
    %s156 = scalar_lea.vmem [#allocation8], 384
    %v157 = vld [vmem:[%s156] sm:$0xff]
    %v158 = vld [vmem:[%s156 + $0x8] sm:$0xff]
    %v159 = vld [vmem:[%s156 + $0x10] sm:$0xff]
    %v160 = vld [vmem:[%s156 + $0x18] sm:$0xff]
    %v161 = vld [vmem:[%s156 + $0x20] sm:$0xff]
    %v162 = vld [vmem:[%s156 + $0x28] sm:$0xff]
    %v163 = vld [vmem:[%s156 + $0x30] sm:$0xff]
    %v164 = vld [vmem:[%s156 + $0x38] sm:$0xff]
    %v165 = vld [vmem:[%s156 + $0x40] sm:$0xff]
    %v166 = vld [vmem:[%s156 + $0x48] sm:$0xff]
    %v167 = vld [vmem:[%s156 + $0x50] sm:$0xff]
    %v168 = vld [vmem:[%s156 + $0x58] sm:$0xff]
    %v169 = vld [vmem:[%s156 + $0x60] sm:$0xff]
    %v170 = vld [vmem:[%s156 + $0x68] sm:$0xff]
    %v171 = vld [vmem:[%s156 + $0x70] sm:$0xff]
    %v172 = vld [vmem:[%s156 + $0x78] sm:$0xff]
    %s173 = scalar_lea.vmem [#allocation8], 512
    %v174 = vld [vmem:[%s173] sm:$0xff]
    %v175 = vld [vmem:[%s173 + $0x8] sm:$0xff]
    %v176 = vld [vmem:[%s173 + $0x10] sm:$0xff]
    %v177 = vld [vmem:[%s173 + $0x18] sm:$0xff]
    %v178 = vld [vmem:[%s173 + $0x20] sm:$0xff]
    %v179 = vld [vmem:[%s173 + $0x28] sm:$0xff]
    %v180 = vld [vmem:[%s173 + $0x30] sm:$0xff]
    %v181 = vld [vmem:[%s173 + $0x38] sm:$0xff]
    %v182 = vld [vmem:[%s173 + $0x40] sm:$0xff]
    %v183 = vld [vmem:[%s173 + $0x48] sm:$0xff]
    %v184 = vld [vmem:[%s173 + $0x50] sm:$0xff]
    %v185 = vld [vmem:[%s173 + $0x58] sm:$0xff]
    %v186 = vld [vmem:[%s173 + $0x60] sm:$0xff]
    %v187 = vld [vmem:[%s173 + $0x68] sm:$0xff]
    %v188 = vld [vmem:[%s173 + $0x70] sm:$0xff]
    %v189 = vld [vmem:[%s173 + $0x78] sm:$0xff]
    %v190 = vld [vmem:[%s4] sm:$0xff]
    %v191 = vlaneseq
    %v192 = vshrl.u32 %v191, 7
    %v193 = vsub.s32 0, %v192
    %v194 = vrot.slane %v190, %v193
    %195 = vmatprep.subr.mxu0 0.0
    %196 = vmatpush1.msra.mxu0 %v106
    %197 = vmatprep.subr.mxu0 0.0
    %198 = vmatpush1.msra.mxu0 %v107
    %199 = vmatprep.subr.mxu0 0.0
    %200 = vmatpush1.msra.mxu0 %v108
    %201 = vmatprep.subr.mxu0 0.0
    %202 = vmatpush1.msra.mxu0 %v109
    %203 = vmatprep.subr.mxu0 0.0
    %204 = vmatpush1.msra.mxu0 %v110
    %205 = vmatprep.subr.mxu0 0.0
    %206 = vmatpush1.msra.mxu0 %v111
    %207 = vmatprep.subr.mxu0 0.0
    %208 = vmatpush1.msra.mxu0 %v112
    %209 = vmatprep.subr.mxu0 0.0
    %210 = vmatpush1.msra.mxu0 %v113
    %211 = vmatprep.subr.mxu0 0.0
    %212 = vmatpush1.msra.mxu0 %v114
    %213 = vmatprep.subr.mxu0 0.0
    %214 = vmatpush1.msra.mxu0 %v115
    %215 = vmatprep.subr.mxu0 0.0
    %216 = vmatpush1.msra.mxu0 %v116
    %217 = vmatprep.subr.mxu0 0.0
    %218 = vmatpush1.msra.mxu0 %v117
    %219 = vmatprep.subr.mxu0 0.0
    %220 = vmatpush1.msra.mxu0 %v118
    %221 = vmatprep.subr.mxu0 0.0
    %222 = vmatpush1.msra.mxu0 %v119
    %223 = vmatprep.subr.mxu0 0.0
    %224 = vmatpush1.msra.mxu0 %v120
    %225 = vmatprep.subr.mxu0 0.0
    %226 = vmatpush1.msra.mxu0 %v121
    %227 = vmatprep.subr.mxu0 0.0
    %228 = vmatpush1.msra.mxu0 0.0
    %229 = vmatprep.subr.mxu0 0.0
    %230 = vmatpush1.msra.mxu0 0.0
    %231 = vmatprep.subr.mxu0 0.0
    %232 = vmatpush1.msra.mxu0 0.0
    %233 = vmatprep.subr.mxu0 0.0
    %234 = vmatpush1.msra.mxu0 0.0
    %235 = vmatprep.subr.mxu0 0.0
    %236 = vmatpush1.msra.mxu0 0.0
    %237 = vmatprep.subr.mxu0 0.0
    %238 = vmatpush1.msra.mxu0 0.0
    %239 = vmatprep.subr.mxu0 0.0
    %240 = vmatpush1.msra.mxu0 0.0
    %241 = vmatprep.subr.mxu0 0.0
    %242 = vmatpush1.msra.mxu0 0.0
    %243 = vmatprep.subr.mxu0 0.0
    %244 = vmatpush1.msra.mxu0 0.0
    %245 = vmatprep.subr.mxu0 0.0
    %246 = vmatpush1.msra.mxu0 0.0
    %247 = vmatprep.subr.mxu0 0.0
    %248 = vmatpush1.msra.mxu0 0.0
    %249 = vmatprep.subr.mxu0 0.0
    %250 = vmatpush1.msra.mxu0 0.0
    %251 = vmatprep.subr.mxu0 0.0
    %252 = vmatpush1.msra.mxu0 0.0
    %253 = vmatprep.subr.mxu0 0.0
    %254 = vmatpush1.msra.mxu0 0.0
    %255 = vmatprep.subr.mxu0 0.0
    %256 = vmatpush1.msra.mxu0 0.0
    %257 = vmatprep.subr.mxu0 0.0
    %258 = vmatpush1.msra.mxu0 0.0
    %259 = vmatprep.mubr.f32.mxu0 0.0
    %260 = vmatmul.mubr.f32.gmra.mrb[0].mxu0 %v103
    %v261 = vpop.f32.mrb[0].mxu0
    %v262 = vadd.f32 %v194, %v261
    %v263 = vpop.f32.mrb[0].mxu0
    %264 = vdwg.mxu0
    %v265 = vlaneseq
    %v266 = vshrl.u32 %v265, 7
    %v267 = vsub.s32 1, %v266
    %v268 = vrot.slane %v190, %v267
    %269 = vmatprep.subr.mxu0 0.0
    %270 = vmatpush1.msra.mxu0 %v123
    %271 = vmatprep.subr.mxu0 0.0
    %272 = vmatpush1.msra.mxu0 %v124
    %273 = vmatprep.subr.mxu0 0.0
    %274 = vmatpush1.msra.mxu0 %v125
    %275 = vmatprep.subr.mxu0 0.0
    %276 = vmatpush1.msra.mxu0 %v126
    %277 = vmatprep.subr.mxu0 0.0
    %278 = vmatpush1.msra.mxu0 %v127
    %279 = vmatprep.subr.mxu0 0.0
    %280 = vmatpush1.msra.mxu0 %v128
    %281 = vmatprep.subr.mxu0 0.0
    %282 = vmatpush1.msra.mxu0 %v129
    %283 = vmatprep.subr.mxu0 0.0
    %284 = vmatpush1.msra.mxu0 %v130
    %285 = vmatprep.subr.mxu0 0.0
    %286 = vmatpush1.msra.mxu0 %v131
    %287 = vmatprep.subr.mxu0 0.0
    %288 = vmatpush1.msra.mxu0 %v132
    %289 = vmatprep.subr.mxu0 0.0
    %290 = vmatpush1.msra.mxu0 %v133
    %291 = vmatprep.subr.mxu0 0.0
    %292 = vmatpush1.msra.mxu0 %v134
    %293 = vmatprep.subr.mxu0 0.0
    %294 = vmatpush1.msra.mxu0 %v135
    %295 = vmatprep.subr.mxu0 0.0
    %296 = vmatpush1.msra.mxu0 %v136
    %297 = vmatprep.subr.mxu0 0.0
    %298 = vmatpush1.msra.mxu0 %v137
    %299 = vmatprep.subr.mxu0 0.0
    %300 = vmatpush1.msra.mxu0 %v138
    %301 = vmatprep.subr.mxu0 0.0
    %302 = vmatpush1.msra.mxu0 0.0
    %303 = vmatprep.subr.mxu0 0.0
    %304 = vmatpush1.msra.mxu0 0.0
    %305 = vmatprep.subr.mxu0 0.0
    %306 = vmatpush1.msra.mxu0 0.0
    %307 = vmatprep.subr.mxu0 0.0
    %308 = vmatpush1.msra.mxu0 0.0
    %309 = vmatprep.subr.mxu0 0.0
    %310 = vmatpush1.msra.mxu0 0.0
    %311 = vmatprep.subr.mxu0 0.0
    %312 = vmatpush1.msra.mxu0 0.0
    %313 = vmatprep.subr.mxu0 0.0
    %314 = vmatpush1.msra.mxu0 0.0
    %315 = vmatprep.subr.mxu0 0.0
    %316 = vmatpush1.msra.mxu0 0.0
    %317 = vmatprep.subr.mxu0 0.0
    %318 = vmatpush1.msra.mxu0 0.0
    %319 = vmatprep.subr.mxu0 0.0
    %320 = vmatpush1.msra.mxu0 0.0
    %321 = vmatprep.subr.mxu0 0.0
    %322 = vmatpush1.msra.mxu0 0.0
    %323 = vmatprep.subr.mxu0 0.0
    %324 = vmatpush1.msra.mxu0 0.0
    %325 = vmatprep.subr.mxu0 0.0
    %326 = vmatpush1.msra.mxu0 0.0
    %327 = vmatprep.subr.mxu0 0.0
    %328 = vmatpush1.msra.mxu0 0.0
    %329 = vmatprep.subr.mxu0 0.0
    %330 = vmatpush1.msra.mxu0 0.0
    %331 = vmatprep.subr.mxu0 0.0
    %332 = vmatpush1.msra.mxu0 0.0
    %333 = vmatprep.mubr.f32.mxu0 0.0
    %334 = vmatmul.mubr.f32.gmra.mrb[0].mxu0 %v104
    %v335 = vpop.f32.mrb[0].mxu0
    %v336 = vadd.f32 %v268, %v335
    %v337 = vpop.f32.mrb[0].mxu0
    %338 = vdwg.mxu0
    %v339 = vlaneseq
    %v340 = vshrl.u32 %v339, 7
    %v341 = vsub.s32 2, %v340
    %v342 = vrot.slane %v190, %v341
    %343 = vmatprep.subr.mxu0 0.0
    %344 = vmatpush1.msra.mxu0 %v140
    %345 = vmatprep.subr.mxu0 0.0
    %346 = vmatpush1.msra.mxu0 %v141
    %347 = vmatprep.subr.mxu0 0.0
    %348 = vmatpush1.msra.mxu0 %v142
    %349 = vmatprep.subr.mxu0 0.0
    %350 = vmatpush1.msra.mxu0 %v143
    %351 = vmatprep.subr.mxu0 0.0
    %352 = vmatpush1.msra.mxu0 %v144
    %353 = vmatprep.subr.mxu0 0.0
    %354 = vmatpush1.msra.mxu0 %v145
    %355 = vmatprep.subr.mxu0 0.0
    %356 = vmatpush1.msra.mxu0 %v146
    %357 = vmatprep.subr.mxu0 0.0
    %358 = vmatpush1.msra.mxu0 %v147
    %359 = vmatprep.subr.mxu0 0.0
    %360 = vmatpush1.msra.mxu0 %v148
    %361 = vmatprep.subr.mxu0 0.0
    %362 = vmatpush1.msra.mxu0 %v149
    %363 = vmatprep.subr.mxu0 0.0
    %364 = vmatpush1.msra.mxu0 %v150
    %365 = vmatprep.subr.mxu0 0.0
    %366 = vmatpush1.msra.mxu0 %v151
    %367 = vmatprep.subr.mxu0 0.0
    %368 = vmatpush1.msra.mxu0 %v152
    %369 = vmatprep.subr.mxu0 0.0
    %370 = vmatpush1.msra.mxu0 %v153
    %371 = vmatprep.subr.mxu0 0.0
    %372 = vmatpush1.msra.mxu0 %v154
    %373 = vmatprep.subr.mxu0 0.0
    %374 = vmatpush1.msra.mxu0 %v155
    %375 = vmatprep.subr.mxu0 0.0
    %376 = vmatpush1.msra.mxu0 0.0
    %377 = vmatprep.subr.mxu0 0.0
    %378 = vmatpush1.msra.mxu0 0.0
    %379 = vmatprep.subr.mxu0 0.0
    %380 = vmatpush1.msra.mxu0 0.0
    %381 = vmatprep.subr.mxu0 0.0
    %382 = vmatpush1.msra.mxu0 0.0
    %383 = vmatprep.subr.mxu0 0.0
    %384 = vmatpush1.msra.mxu0 0.0
    %385 = vmatprep.subr.mxu0 0.0
    %386 = vmatpush1.msra.mxu0 0.0
    %387 = vmatprep.subr.mxu0 0.0
    %388 = vmatpush1.msra.mxu0 0.0
    %389 = vmatprep.subr.mxu0 0.0
    %390 = vmatpush1.msra.mxu0 0.0
    %391 = vmatprep.subr.mxu0 0.0
    %392 = vmatpush1.msra.mxu0 0.0
    %393 = vmatprep.subr.mxu0 0.0
    %394 = vmatpush1.msra.mxu0 0.0
    %395 = vmatprep.subr.mxu0 0.0
    %396 = vmatpush1.msra.mxu0 0.0
    %397 = vmatprep.subr.mxu0 0.0
    %398 = vmatpush1.msra.mxu0 0.0
    %399 = vmatprep.subr.mxu0 0.0
    %400 = vmatpush1.msra.mxu0 0.0
    %401 = vmatprep.subr.mxu0 0.0
    %402 = vmatpush1.msra.mxu0 0.0
    %403 = vmatprep.subr.mxu0 0.0
    %404 = vmatpush1.msra.mxu0 0.0
    %405 = vmatprep.subr.mxu0 0.0
    %406 = vmatpush1.msra.mxu0 0.0
    %407 = vmatprep.mubr.f32.mxu0 0.0
    %408 = vmatmul.mubr.f32.gmra.mrb[0].mxu0 %v105
    %v409 = vpop.f32.mrb[0].mxu0
    %v410 = vadd.f32 %v342, %v409
    %v411 = vpop.f32.mrb[0].mxu0
    %412 = vdwg.mxu0
    %v413 = vld [vmem:[#allocation10] sm:$0xff]
    %v414 = vld [vmem:[#allocation10 + $0x8] sm:$0xff]
    %v415 = vld [vmem:[#allocation10 + $0x10] sm:$0xff]
    %v416 = vld [vmem:[#allocation10 + $0x18] sm:$0xff]
    %v417 = vld [vmem:[#allocation10 + $0x20] sm:$0xff]
    %v418 = vld [vmem:[#allocation10 + $0x28] sm:$0xff]
    %v419 = vld [vmem:[#allocation10 + $0x30] sm:$0xff]
    %v420 = vld [vmem:[#allocation10 + $0x38] sm:$0xff]
    %v421 = vld [vmem:[#allocation10 + $0x40] sm:$0xff]
    %v422 = vld [vmem:[#allocation10 + $0x48] sm:$0xff]
    %v423 = vld [vmem:[#allocation10 + $0x50] sm:$0xff]
    %v424 = vld [vmem:[#allocation10 + $0x58] sm:$0xff]
    %v425 = vld [vmem:[#allocation10 + $0x60] sm:$0xff]
    %v426 = vld [vmem:[#allocation10 + $0x68] sm:$0xff]
    %v427 = vld [vmem:[#allocation10 + $0x70] sm:$0xff]
    %v428 = vld [vmem:[#allocation10 + $0x78] sm:$0xff]
    %v429 = vmul.f32 %v336, %v413
    %v430 = vmul.f32 %v336, %v414
    %v431 = vmul.f32 %v336, %v415
    %v432 = vmul.f32 %v336, %v416
    %v433 = vmul.f32 %v336, %v417
    %v434 = vmul.f32 %v336, %v418
    %v435 = vmul.f32 %v336, %v419
    %v436 = vmul.f32 %v336, %v420
    %v437 = vmul.f32 %v336, %v421
    %v438 = vmul.f32 %v336, %v422
    %v439 = vmul.f32 %v336, %v423
    %v440 = vmul.f32 %v336, %v424
    %v441 = vmul.f32 %v336, %v425
    %v442 = vmul.f32 %v336, %v426
    %v443 = vmul.f32 %v336, %v427
    %v444 = vmul.f32 %v336, %v428
    %v445 = vmul.f32 %v410, %v413
    %v446 = vmul.f32 %v410, %v414
    %v447 = vmul.f32 %v410, %v415
    %v448 = vmul.f32 %v410, %v416
    %v449 = vmul.f32 %v410, %v417
    %v450 = vmul.f32 %v410, %v418
    %v451 = vmul.f32 %v410, %v419
    %v452 = vmul.f32 %v410, %v420
    %v453 = vmul.f32 %v410, %v421
    %v454 = vmul.f32 %v410, %v422
    %v455 = vmul.f32 %v410, %v423
    %v456 = vmul.f32 %v410, %v424
    %v457 = vmul.f32 %v410, %v425
    %v458 = vmul.f32 %v410, %v426
    %v459 = vmul.f32 %v410, %v427
    %v460 = vmul.f32 %v410, %v428
    %461 = vmatprep.subr.mxu0 0.0
    %462 = vmatpush1.xpose.msra.mxu0 %v429
    %463 = vmatprep.subr.mxu0 0.0
    %464 = vmatpush1.xpose.msra.mxu0 %v430
    %465 = vmatprep.subr.mxu0 0.0
    %466 = vmatpush1.xpose.msra.mxu0 %v431
    %467 = vmatprep.subr.mxu0 0.0
    %468 = vmatpush1.xpose.msra.mxu0 %v432
    %469 = vmatprep.subr.mxu0 0.0
    %470 = vmatpush1.xpose.msra.mxu0 %v433
    %471 = vmatprep.subr.mxu0 0.0
    %472 = vmatpush1.xpose.msra.mxu0 %v434
    %473 = vmatprep.subr.mxu0 0.0
    %474 = vmatpush1.xpose.msra.mxu0 %v435
    %475 = vmatprep.subr.mxu0 0.0
    %476 = vmatpush1.xpose.msra.mxu0 %v436
    %477 = vmatprep.subr.mxu0 0.0
    %478 = vmatpush1.xpose.msra.mxu0 %v437
    %479 = vmatprep.subr.mxu0 0.0
    %480 = vmatpush1.xpose.msra.mxu0 %v438
    %481 = vmatprep.subr.mxu0 0.0
    %482 = vmatpush1.xpose.msra.mxu0 %v439
    %483 = vmatprep.subr.mxu0 0.0
    %484 = vmatpush1.xpose.msra.mxu0 %v440
    %485 = vmatprep.subr.mxu0 0.0
    %486 = vmatpush1.xpose.msra.mxu0 %v441
    %487 = vmatprep.subr.mxu0 0.0
    %488 = vmatpush1.xpose.msra.mxu0 %v442
    %489 = vmatprep.subr.mxu0 0.0
    %490 = vmatpush1.xpose.msra.mxu0 %v443
    %491 = vmatprep.subr.mxu0 0.0
    %492 = vmatpush1.xpose.msra.mxu0 %v444
    %493 = vmatprep.subr.mxu0 0.0
    %494 = vmatpush1.xpose.msra.mxu0 0.0
    %495 = vmatprep.subr.mxu0 0.0
    %496 = vmatpush1.xpose.msra.mxu0 0.0
    %497 = vmatprep.subr.mxu0 0.0
    %498 = vmatpush1.xpose.msra.mxu0 0.0
    %499 = vmatprep.subr.mxu0 0.0
    %500 = vmatpush1.xpose.msra.mxu0 0.0
    %501 = vmatprep.subr.mxu0 0.0
    %502 = vmatpush1.xpose.msra.mxu0 0.0
    %503 = vmatprep.subr.mxu0 0.0
    %504 = vmatpush1.xpose.msra.mxu0 0.0
    %505 = vmatprep.subr.mxu0 0.0
    %506 = vmatpush1.xpose.msra.mxu0 0.0
    %507 = vmatprep.subr.mxu0 0.0
    %508 = vmatpush1.xpose.msra.mxu0 0.0
    %509 = vmatprep.subr.mxu0 0.0
    %510 = vmatpush1.xpose.msra.mxu0 0.0
    %511 = vmatprep.subr.mxu0 0.0
    %512 = vmatpush1.xpose.msra.mxu0 0.0
    %513 = vmatprep.subr.mxu0 0.0
    %514 = vmatpush1.xpose.msra.mxu0 0.0
    %515 = vmatprep.subr.mxu0 0.0
    %516 = vmatpush1.xpose.msra.mxu0 0.0
    %517 = vmatprep.subr.mxu0 0.0
    %518 = vmatpush1.xpose.msra.mxu0 0.0
    %519 = vmatprep.subr.mxu0 0.0
    %520 = vmatpush1.xpose.msra.mxu0 0.0
    %521 = vmatprep.subr.mxu0 0.0
    %522 = vmatpush1.xpose.msra.mxu0 0.0
    %523 = vmatprep.subr.mxu0 0.0
    %524 = vmatpush1.xpose.msra.mxu0 0.0
    %525 = vmatprep.mubr.f32.mxu0 0.0
    %526 = vmatmul.mubr.f32.gmra.mrb[0].mxu0 %v262
    %v527 = vpop.f32.mrb[0].mxu0
    %v528 = vadd.f32 0.0, %v527
    %v529 = vpop.f32.mrb[0].mxu0
    %530 = vdwg.mxu0
    %531 = vmax.xlane.f32.xlu0 %v528
    %v532 = vpop.xlane.xlu0 %531
    %v533 = vsub.f32 %v528, %v532
    %v534 = vmul.f32 %v533, 1.442695
    %v535 = vpow.pop %v534
    %v536 = vld [vmem:[#allocation11] sm:$0xff]
    %v537 = vld [vmem:[#allocation11 + $0x8] sm:$0xff]
    %v538 = vld [vmem:[#allocation11 + $0x10] sm:$0xff]
    %v539 = vld [vmem:[#allocation11 + $0x18] sm:$0xff]
    %v540 = vld [vmem:[#allocation11 + $0x20] sm:$0xff]
    %v541 = vld [vmem:[#allocation11 + $0x28] sm:$0xff]
    %v542 = vld [vmem:[#allocation11 + $0x30] sm:$0xff]
    %v543 = vld [vmem:[#allocation11 + $0x38] sm:$0xff]
    %v544 = vld [vmem:[#allocation11 + $0x40] sm:$0xff]
    %v545 = vld [vmem:[#allocation11 + $0x48] sm:$0xff]
    %v546 = vld [vmem:[#allocation11 + $0x50] sm:$0xff]
    %v547 = vld [vmem:[#allocation11 + $0x58] sm:$0xff]
    %v548 = vld [vmem:[#allocation11 + $0x60] sm:$0xff]
    %v549 = vld [vmem:[#allocation11 + $0x68] sm:$0xff]
    %v550 = vld [vmem:[#allocation11 + $0x70] sm:$0xff]
    %v551 = vld [vmem:[#allocation11 + $0x78] sm:$0xff]
    %552 = vmatprep.subr.mxu0 0.0
    %553 = vmatpush1.msra.mxu0 %v536
    %554 = vmatprep.subr.mxu0 0.0
    %555 = vmatpush1.msra.mxu0 %v537
    %556 = vmatprep.subr.mxu0 0.0
    %557 = vmatpush1.msra.mxu0 %v538
    %558 = vmatprep.subr.mxu0 0.0
    %559 = vmatpush1.msra.mxu0 %v539
    %560 = vmatprep.subr.mxu0 0.0
    %561 = vmatpush1.msra.mxu0 %v540
    %562 = vmatprep.subr.mxu0 0.0
    %563 = vmatpush1.msra.mxu0 %v541
    %564 = vmatprep.subr.mxu0 0.0
    %565 = vmatpush1.msra.mxu0 %v542
    %566 = vmatprep.subr.mxu0 0.0
    %567 = vmatpush1.msra.mxu0 %v543
    %568 = vmatprep.subr.mxu0 0.0
    %569 = vmatpush1.msra.mxu0 %v544
    %570 = vmatprep.subr.mxu0 0.0
    %571 = vmatpush1.msra.mxu0 %v545
    %572 = vmatprep.subr.mxu0 0.0
    %573 = vmatpush1.msra.mxu0 %v546
    %574 = vmatprep.subr.mxu0 0.0
    %575 = vmatpush1.msra.mxu0 %v547
    %576 = vmatprep.subr.mxu0 0.0
    %577 = vmatpush1.msra.mxu0 %v548
    %578 = vmatprep.subr.mxu0 0.0
    %579 = vmatpush1.msra.mxu0 %v549
    %580 = vmatprep.subr.mxu0 0.0
    %581 = vmatpush1.msra.mxu0 %v550
    %582 = vmatprep.subr.mxu0 0.0
    %583 = vmatpush1.msra.mxu0 %v551
    %584 = vmatprep.subr.mxu0 0.0
    %585 = vmatpush1.msra.mxu0 0.0
    %586 = vmatprep.subr.mxu0 0.0
    %587 = vmatpush1.msra.mxu0 0.0
    %588 = vmatprep.subr.mxu0 0.0
    %589 = vmatpush1.msra.mxu0 0.0
    %590 = vmatprep.subr.mxu0 0.0
    %591 = vmatpush1.msra.mxu0 0.0
    %592 = vmatprep.subr.mxu0 0.0
    %593 = vmatpush1.msra.mxu0 0.0
    %594 = vmatprep.subr.mxu0 0.0
    %595 = vmatpush1.msra.mxu0 0.0
    %596 = vmatprep.subr.mxu0 0.0
    %597 = vmatpush1.msra.mxu0 0.0
    %598 = vmatprep.subr.mxu0 0.0
    %599 = vmatpush1.msra.mxu0 0.0
    %600 = vmatprep.subr.mxu0 0.0
    %601 = vmatpush1.msra.mxu0 0.0
    %602 = vmatprep.subr.mxu0 0.0
    %603 = vmatpush1.msra.mxu0 0.0
    %604 = vmatprep.subr.mxu0 0.0
    %605 = vmatpush1.msra.mxu0 0.0
    %606 = vmatprep.subr.mxu0 0.0
    %607 = vmatpush1.msra.mxu0 0.0
    %608 = vmatprep.subr.mxu0 0.0
    %609 = vmatpush1.msra.mxu0 0.0
    %610 = vmatprep.subr.mxu0 0.0
    %611 = vmatpush1.msra.mxu0 0.0
    %612 = vmatprep.subr.mxu0 0.0
    %613 = vmatpush1.msra.mxu0 0.0
    %614 = vmatprep.subr.mxu0 0.0
    %615 = vmatpush1.msra.mxu0 0.0
    %616 = vmatprep.mubr.f32.mxu0 0.0
    %617 = vmatmul.mubr.f32.gmra.mrb[0].mxu0 %v535
    %v618 = vpop.f32.mrb[0].mxu0
    %v619 = vadd.f32 0.0, %v618
    %v620 = vpop.f32.mrb[0].mxu0
    %621 = vdwg.mxu0
    %v622 = vrcp.pop %v619
    %v623 = vmul.f32 %v619, %v622
    %v624 = vsub.f32 2.0, %v623
    %v625 = vmul.f32 %v622, %v624
    %v626 = vmul.f32 %v535, %v625
    %627 = vmatprep.subr.mxu0 0.0
    %628 = vmatpush1.msra.mxu0 %v445
    %629 = vmatprep.subr.mxu0 0.0
    %630 = vmatpush1.msra.mxu0 %v446
    %631 = vmatprep.subr.mxu0 0.0
    %632 = vmatpush1.msra.mxu0 %v447
    %633 = vmatprep.subr.mxu0 0.0
    %634 = vmatpush1.msra.mxu0 %v448
    %635 = vmatprep.subr.mxu0 0.0
    %636 = vmatpush1.msra.mxu0 %v449
    %637 = vmatprep.subr.mxu0 0.0
    %638 = vmatpush1.msra.mxu0 %v450
    %639 = vmatprep.subr.mxu0 0.0
    %640 = vmatpush1.msra.mxu0 %v451
    %641 = vmatprep.subr.mxu0 0.0
    %642 = vmatpush1.msra.mxu0 %v452
    %643 = vmatprep.subr.mxu0 0.0
    %644 = vmatpush1.msra.mxu0 %v453
    %645 = vmatprep.subr.mxu0 0.0
    %646 = vmatpush1.msra.mxu0 %v454
    %647 = vmatprep.subr.mxu0 0.0
    %648 = vmatpush1.msra.mxu0 %v455
    %649 = vmatprep.subr.mxu0 0.0
    %650 = vmatpush1.msra.mxu0 %v456
    %651 = vmatprep.subr.mxu0 0.0
    %652 = vmatpush1.msra.mxu0 %v457
    %653 = vmatprep.subr.mxu0 0.0
    %654 = vmatpush1.msra.mxu0 %v458
    %655 = vmatprep.subr.mxu0 0.0
    %656 = vmatpush1.msra.mxu0 %v459
    %657 = vmatprep.subr.mxu0 0.0
    %658 = vmatpush1.msra.mxu0 %v460
    %659 = vmatprep.subr.mxu0 0.0
    %660 = vmatpush1.msra.mxu0 0.0
    %661 = vmatprep.subr.mxu0 0.0
    %662 = vmatpush1.msra.mxu0 0.0
    %663 = vmatprep.subr.mxu0 0.0
    %664 = vmatpush1.msra.mxu0 0.0
    %665 = vmatprep.subr.mxu0 0.0
    %666 = vmatpush1.msra.mxu0 0.0
    %667 = vmatprep.subr.mxu0 0.0
    %668 = vmatpush1.msra.mxu0 0.0
    %669 = vmatprep.subr.mxu0 0.0
    %670 = vmatpush1.msra.mxu0 0.0
    %671 = vmatprep.subr.mxu0 0.0
    %672 = vmatpush1.msra.mxu0 0.0
    %673 = vmatprep.subr.mxu0 0.0
    %674 = vmatpush1.msra.mxu0 0.0
    %675 = vmatprep.subr.mxu0 0.0
    %676 = vmatpush1.msra.mxu0 0.0
    %677 = vmatprep.subr.mxu0 0.0
    %678 = vmatpush1.msra.mxu0 0.0
    %679 = vmatprep.subr.mxu0 0.0
    %680 = vmatpush1.msra.mxu0 0.0
    %681 = vmatprep.subr.mxu0 0.0
    %682 = vmatpush1.msra.mxu0 0.0
    %683 = vmatprep.subr.mxu0 0.0
    %684 = vmatpush1.msra.mxu0 0.0
    %685 = vmatprep.subr.mxu0 0.0
    %686 = vmatpush1.msra.mxu0 0.0
    %687 = vmatprep.subr.mxu0 0.0
    %688 = vmatpush1.msra.mxu0 0.0
    %689 = vmatprep.subr.mxu0 0.0
    %690 = vmatpush1.msra.mxu0 0.0
    %691 = vmatprep.mubr.f32.mxu0 0.0
    %692 = vmatmul.mubr.f32.gmra.mrb[0].mxu0 %v626
    %v693 = vpop.f32.mrb[0].mxu0
    %v694 = vadd.f32 0.0, %v693
    %v695 = vpop.f32.mrb[0].mxu0
    %696 = vdwg.mxu0
    %v697 = vlaneseq
    %v698 = vshrl.u32 %v697, 7
    %v699 = vsub.s32 3, %v698
    %v700 = vrot.slane %v190, %v699
    %701 = vmatprep.subr.mxu0 0.0
    %702 = vmatpush1.msra.mxu0 %v157
    %703 = vmatprep.subr.mxu0 0.0
    %704 = vmatpush1.msra.mxu0 %v158
    %705 = vmatprep.subr.mxu0 0.0
    %706 = vmatpush1.msra.mxu0 %v159
    %707 = vmatprep.subr.mxu0 0.0
    %708 = vmatpush1.msra.mxu0 %v160
    %709 = vmatprep.subr.mxu0 0.0
    %710 = vmatpush1.msra.mxu0 %v161
    %711 = vmatprep.subr.mxu0 0.0
    %712 = vmatpush1.msra.mxu0 %v162
    %713 = vmatprep.subr.mxu0 0.0
    %714 = vmatpush1.msra.mxu0 %v163
    %715 = vmatprep.subr.mxu0 0.0
    %716 = vmatpush1.msra.mxu0 %v164
    %717 = vmatprep.subr.mxu0 0.0
    %718 = vmatpush1.msra.mxu0 %v165
    %719 = vmatprep.subr.mxu0 0.0
    %720 = vmatpush1.msra.mxu0 %v166
    %721 = vmatprep.subr.mxu0 0.0
    %722 = vmatpush1.msra.mxu0 %v167
    %723 = vmatprep.subr.mxu0 0.0
    %724 = vmatpush1.msra.mxu0 %v168
    %725 = vmatprep.subr.mxu0 0.0
    %726 = vmatpush1.msra.mxu0 %v169
    %727 = vmatprep.subr.mxu0 0.0
    %728 = vmatpush1.msra.mxu0 %v170
    %729 = vmatprep.subr.mxu0 0.0
    %730 = vmatpush1.msra.mxu0 %v171
    %731 = vmatprep.subr.mxu0 0.0
    %732 = vmatpush1.msra.mxu0 %v172
    %733 = vmatprep.subr.mxu0 0.0
    %734 = vmatpush1.msra.mxu0 0.0
    %735 = vmatprep.subr.mxu0 0.0
    %736 = vmatpush1.msra.mxu0 0.0
    %737 = vmatprep.subr.mxu0 0.0
    %738 = vmatpush1.msra.mxu0 0.0
    %739 = vmatprep.subr.mxu0 0.0
    %740 = vmatpush1.msra.mxu0 0.0
    %741 = vmatprep.subr.mxu0 0.0
    %742 = vmatpush1.msra.mxu0 0.0
    %743 = vmatprep.subr.mxu0 0.0
    %744 = vmatpush1.msra.mxu0 0.0
    %745 = vmatprep.subr.mxu0 0.0
    %746 = vmatpush1.msra.mxu0 0.0
    %747 = vmatprep.subr.mxu0 0.0
    %748 = vmatpush1.msra.mxu0 0.0
    %749 = vmatprep.subr.mxu0 0.0
    %750 = vmatpush1.msra.mxu0 0.0
    %751 = vmatprep.subr.mxu0 0.0
    %752 = vmatpush1.msra.mxu0 0.0
    %753 = vmatprep.subr.mxu0 0.0
    %754 = vmatpush1.msra.mxu0 0.0
    %755 = vmatprep.subr.mxu0 0.0
    %756 = vmatpush1.msra.mxu0 0.0
    %757 = vmatprep.subr.mxu0 0.0
    %758 = vmatpush1.msra.mxu0 0.0
    %759 = vmatprep.subr.mxu0 0.0
    %760 = vmatpush1.msra.mxu0 0.0
    %761 = vmatprep.subr.mxu0 0.0
    %762 = vmatpush1.msra.mxu0 0.0
    %763 = vmatprep.subr.mxu0 0.0
    %764 = vmatpush1.msra.mxu0 0.0
    %765 = vmatprep.mubr.f32.mxu0 0.0
    %766 = vmatmul.mubr.f32.gmra.mrb[0].mxu0 %v694
    %v767 = vpop.f32.mrb[0].mxu0
    %v768 = vadd.f32 %v700, %v767
    %v769 = vpop.f32.mrb[0].mxu0
    %770 = vdwg.mxu0
    %v771 = vadd.f32 %v103, %v768
    %772 = vmatprep.subr.mxu0 0.0
    %773 = vmatpush1.msra.mxu0 %v174
    %774 = vmatprep.subr.mxu0 0.0
    %775 = vmatpush1.msra.mxu0 %v175
    %776 = vmatprep.subr.mxu0 0.0
    %777 = vmatpush1.msra.mxu0 %v176
    %778 = vmatprep.subr.mxu0 0.0
    %779 = vmatpush1.msra.mxu0 %v177
    %780 = vmatprep.subr.mxu0 0.0
    %781 = vmatpush1.msra.mxu0 %v178
    %782 = vmatprep.subr.mxu0 0.0
    %783 = vmatpush1.msra.mxu0 %v179
    %784 = vmatprep.subr.mxu0 0.0
    %785 = vmatpush1.msra.mxu0 %v180
    %786 = vmatprep.subr.mxu0 0.0
    %787 = vmatpush1.msra.mxu0 %v181
    %788 = vmatprep.subr.mxu0 0.0
    %789 = vmatpush1.msra.mxu0 %v182
    %790 = vmatprep.subr.mxu0 0.0
    %791 = vmatpush1.msra.mxu0 %v183
    %792 = vmatprep.subr.mxu0 0.0
    %793 = vmatpush1.msra.mxu0 %v184
    %794 = vmatprep.subr.mxu0 0.0
    %795 = vmatpush1.msra.mxu0 %v185
    %796 = vmatprep.subr.mxu0 0.0
    %797 = vmatpush1.msra.mxu0 %v186
    %798 = vmatprep.subr.mxu0 0.0
    %799 = vmatpush1.msra.mxu0 %v187
    %800 = vmatprep.subr.mxu0 0.0
    %801 = vmatpush1.msra.mxu0 %v188
    %802 = vmatprep.subr.mxu0 0.0
    %803 = vmatpush1.msra.mxu0 %v189
    %804 = vmatprep.subr.mxu0 0.0
    %805 = vmatpush1.msra.mxu0 0.0
    %806 = vmatprep.subr.mxu0 0.0
    %807 = vmatpush1.msra.mxu0 0.0
    %808 = vmatprep.subr.mxu0 0.0
    %809 = vmatpush1.msra.mxu0 0.0
    %810 = vmatprep.subr.mxu0 0.0
    %811 = vmatpush1.msra.mxu0 0.0
    %812 = vmatprep.subr.mxu0 0.0
    %813 = vmatpush1.msra.mxu0 0.0
    %814 = vmatprep.subr.mxu0 0.0
    %815 = vmatpush1.msra.mxu0 0.0
    %816 = vmatprep.subr.mxu0 0.0
    %817 = vmatpush1.msra.mxu0 0.0
    %818 = vmatprep.subr.mxu0 0.0
    %819 = vmatpush1.msra.mxu0 0.0
    %820 = vmatprep.subr.mxu0 0.0
    %821 = vmatpush1.msra.mxu0 0.0
    %822 = vmatprep.subr.mxu0 0.0
    %823 = vmatpush1.msra.mxu0 0.0
    %824 = vmatprep.subr.mxu0 0.0
    %825 = vmatpush1.msra.mxu0 0.0
    %826 = vmatprep.subr.mxu0 0.0
    %827 = vmatpush1.msra.mxu0 0.0
    %828 = vmatprep.subr.mxu0 0.0
    %829 = vmatpush1.msra.mxu0 0.0
    %830 = vmatprep.subr.mxu0 0.0
    %831 = vmatpush1.msra.mxu0 0.0
    %832 = vmatprep.subr.mxu0 0.0
    %833 = vmatpush1.msra.mxu0 0.0
    %834 = vmatprep.subr.mxu0 0.0
    %835 = vmatpush1.msra.mxu0 0.0
    %836 = vmatprep.mubr.f32.mxu0 0.0
    %837 = vmatmul.mubr.f32.gmra.mrb[0].mxu0 %v771
    %v838 = vpop.f32.mrb[0].mxu0
    %v839 = vadd.f32 0.0, %v838
    %v840 = vpop.f32.mrb[0].mxu0
    %841 = vdwg.mxu0
    %v842 = vsub.f32 %v771, %v839
    %v843 = vmul.f32 %v842, %v842
    %844 = vmatprep.subr.mxu0 0.0
    %845 = vmatpush1.msra.mxu0 %v174
    %846 = vmatprep.subr.mxu0 0.0
    %847 = vmatpush1.msra.mxu0 %v175
    %848 = vmatprep.subr.mxu0 0.0
    %849 = vmatpush1.msra.mxu0 %v176
    %850 = vmatprep.subr.mxu0 0.0
    %851 = vmatpush1.msra.mxu0 %v177
    %852 = vmatprep.subr.mxu0 0.0
    %853 = vmatpush1.msra.mxu0 %v178
    %854 = vmatprep.subr.mxu0 0.0
    %855 = vmatpush1.msra.mxu0 %v179
    %856 = vmatprep.subr.mxu0 0.0
    %857 = vmatpush1.msra.mxu0 %v180
    %858 = vmatprep.subr.mxu0 0.0
    %859 = vmatpush1.msra.mxu0 %v181
    %860 = vmatprep.subr.mxu0 0.0
    %861 = vmatpush1.msra.mxu0 %v182
    %862 = vmatprep.subr.mxu0 0.0
    %863 = vmatpush1.msra.mxu0 %v183
    %864 = vmatprep.subr.mxu0 0.0
    %865 = vmatpush1.msra.mxu0 %v184
    %866 = vmatprep.subr.mxu0 0.0
    %867 = vmatpush1.msra.mxu0 %v185
    %868 = vmatprep.subr.mxu0 0.0
    %869 = vmatpush1.msra.mxu0 %v186
    %870 = vmatprep.subr.mxu0 0.0
    %871 = vmatpush1.msra.mxu0 %v187
    %872 = vmatprep.subr.mxu0 0.0
    %873 = vmatpush1.msra.mxu0 %v188
    %874 = vmatprep.subr.mxu0 0.0
    %875 = vmatpush1.msra.mxu0 %v189
    %876 = vmatprep.subr.mxu0 0.0
    %877 = vmatpush1.msra.mxu0 0.0
    %878 = vmatprep.subr.mxu0 0.0
    %879 = vmatpush1.msra.mxu0 0.0
    %880 = vmatprep.subr.mxu0 0.0
    %881 = vmatpush1.msra.mxu0 0.0
    %882 = vmatprep.subr.mxu0 0.0
    %883 = vmatpush1.msra.mxu0 0.0
    %884 = vmatprep.subr.mxu0 0.0
    %885 = vmatpush1.msra.mxu0 0.0
    %886 = vmatprep.subr.mxu0 0.0
    %887 = vmatpush1.msra.mxu0 0.0
    %888 = vmatprep.subr.mxu0 0.0
    %889 = vmatpush1.msra.mxu0 0.0
    %890 = vmatprep.subr.mxu0 0.0
    %891 = vmatpush1.msra.mxu0 0.0
    %892 = vmatprep.subr.mxu0 0.0
    %893 = vmatpush1.msra.mxu0 0.0
    %894 = vmatprep.subr.mxu0 0.0
    %895 = vmatpush1.msra.mxu0 0.0
    %896 = vmatprep.subr.mxu0 0.0
    %897 = vmatpush1.msra.mxu0 0.0
    %898 = vmatprep.subr.mxu0 0.0
    %899 = vmatpush1.msra.mxu0 0.0
    %900 = vmatprep.subr.mxu0 0.0
    %901 = vmatpush1.msra.mxu0 0.0
    %902 = vmatprep.subr.mxu0 0.0
    %903 = vmatpush1.msra.mxu0 0.0
    %904 = vmatprep.subr.mxu0 0.0
    %905 = vmatpush1.msra.mxu0 0.0
    %906 = vmatprep.subr.mxu0 0.0
    %907 = vmatpush1.msra.mxu0 0.0
    %908 = vmatprep.mubr.f32.mxu0 0.0
    %909 = vmatmul.mubr.f32.gmra.mrb[0].mxu0 %v843
    %v910 = vpop.f32.mrb[0].mxu0
    %v911 = vadd.f32 1e-05, %v910
    %v912 = vpop.f32.mrb[0].mxu0
    %913 = vdwg.mxu0
    %v914 = vrsqrt.pop %v911
    %v915 = vmul.f32 %v842, %v914
    %v916 = vlaneseq
    %v917 = vshrl.u32 %v916, 7
    %v918 = vsub.s32 4, %v917
    %v919 = vrot.slane %v190, %v918
    %v920 = vmul.f32 %v915, %v919
    %v921 = vlaneseq
    %v922 = vshrl.u32 %v921, 7
    %v923 = vsub.s32 5, %v922
    %v924 = vrot.slane %v190, %v923
    %v925 = vadd.f32 %v920, %v924
    %926 = vst [vmem:[#allocation13] sm:$0xff] %v925
    // Predicated region
    $region54: #{tpu_custom_call.1} parent=1 // pred_check
      _
    $region55: #{tpu_custom_call.1} parent=1 // pred_check_branch
      %928 = sbr.rel (0) target = $region57
    $region56: #{tpu_custom_call.1} parent=1 // pred_region
      %s930 = ssub.s32 128, 128
      %931 = vsyncadd [#allocation4], %s930
      %s933 = sshll.u32 [#allocation13], 4
      %s934 = int_to_ptr.vmem [resolvable:$true] %s933
      %936 = dma.vmem_to_hbm [thread:$0]  %s934, 128, %s7, [#allocation4]
    $region57: #{tpu_custom_call.1} parent=1 // pred_fallthru
      _
    // Predicated region
    $region58: #{tpu_custom_call.1} parent=1 // pred_check
      _
    $region59: #{tpu_custom_call.1} parent=1 // pred_check_branch
      %938 = sbr.rel (0) target = $region61
    $region60: #{tpu_custom_call.1} parent=1 // pred_region
      %939 = dma.done [#allocation4], 128
    $region61: #{tpu_custom_call.1} parent=1 // pred_fallthru
      _
    %940 = vsyncpa [#allocation3], 1
    %941 = vsyncpa [#allocation6], 1
    %942 = vsyncpa [#allocation9], 1
    %943 = vsyncpa [#allocation12], 1
    %944 = vsyncpa [#allocation4], 1

</llo_original>
